<compile_context>
chip_gen: v7x
topology: tpu7x:2x2x1
jax: 0.10.0
libtpu: 0.0.40
codegen_flags: <defaults>
</compile_context>

<pallas_src>
import functools

import jax
import jax.numpy as jnp
from jax.experimental import pallas as pl
from jax.experimental.pallas import tpu as pltpu


def _cdiv(a, b):
    return -(-a // b)


def _round_up(n, m):
    return _cdiv(n, m) * m


def _feature_tiling(num_features, tk):
    """K-axis tiling: n_k tiles of lane-aligned tk_eff; F_pad = n_k * tk_eff."""
    n_k = max(1, _cdiv(num_features, max(tk, 128)))
    tk_eff = _round_up(_cdiv(num_features, n_k), 128)
    f_pad = n_k * tk_eff
    return tk_eff, n_k, f_pad


def _batch_tiling(batch, tb):
    """Batch tiling; prefer >=2 tiles when B > 16 (v7x has 2 TensorCores)."""
    if batch > 16:
        tb_eff = min(tb, _round_up(_cdiv(batch, 2), 16))
    else:
        tb_eff = min(max(tb, 8), 16)
    tb_eff = max(tb_eff, 8)
    n_b = _cdiv(batch, tb_eff)
    return tb_eff, n_b


def _pathway_kernel(x_ref, w1_ref, b1_ref, w2_ref, b2_ref, w3r_ref, b3_ref,
                    o_ref, acc_ref, *, feat, tk):
    # Grid = (batch tiles [parallel], K tiles [arbitrary / reduction]).
    k = pl.program_id(1)

    @pl.when(k == 0)
    def _():
        acc_ref[...] = jnp.zeros_like(acc_ref)

    x_tile = x_ref[...]
    if feat % tk != 0:
        # Last K tile overhangs the true feature count; Pallas leaves the
        # out-of-bounds lanes undefined (possibly NaN) -> zero them explicitly.
        rem = feat - k * tk
        col = jax.lax.broadcasted_iota(jnp.int32, x_tile.shape, 1)
        x_tile = jnp.where(col < rem, x_tile, 0.0)

    # Cast the streamed tile to bf16 just before the MXU dot (f32 accumulate).
    x_bf = x_tile.astype(jnp.bfloat16)

    # W1 is resident in VMEM for the whole kernel; slice this step's K chunk.
    start = pl.multiple_of(k * tk, 128)
    w1_chunk = w1_ref[pl.ds(start, tk), :]
    acc_ref[...] += jnp.dot(x_bf, w1_chunk, preferred_element_type=jnp.float32)

    @pl.when(k == pl.num_programs(1) - 1)
    def _():
        # Layer-1 epilogue: bias + ReLU.  (Dropout is identity in eval mode.)
        h1 = jnp.maximum(acc_ref[...] + b1_ref[...], 0.0)
        # Layer 2: 64 -> 32, f32, resident.
        h2 = jnp.maximum(
            jnp.dot(h1, w2_ref[...], preferred_element_type=jnp.float32)
            + b2_ref[...], 0.0)
        # Layer 3: 32 -> 1 as a VPU reduction (avoids an N=1 MXU matmul).
        y = jnp.sum(h2 * w3r_ref[...], axis=-1, keepdims=True) + b3_ref[...]
        o_ref[...] = y.astype(o_ref.dtype)


def prepare_pathway_params(w1, b1, w2, b2, w3, b3, *, tk=8576):
    """One-time parameter prep (hoisted out of the per-call forward path)."""
    F, H1 = w1.shape
    H2 = w2.shape[1]
    H3 = w3.shape[1]
    tk_eff, _, f_pad = _feature_tiling(F, tk)

    w1_bf = w1.astype(jnp.bfloat16)
    if f_pad != F:
        # Zero rows in the padded K range keep the matmul exact (the matching
        # x lanes are zero-masked inside the kernel).
        w1_bf = jnp.pad(w1_bf, ((0, f_pad - F), (0, 0)))

    params = dict(
        w1=w1_bf,                                      # (F_pad, 64) bf16
        b1=b1.reshape(1, H1).astype(jnp.float32),
        w2=w2.astype(jnp.float32),
        b2=b2.reshape(1, H2).astype(jnp.float32),
        w3r=jnp.transpose(w3).astype(jnp.float32),     # (1, 32) row for VPU
        b3=b3.reshape(1, H3).astype(jnp.float32),
    )
    return params, tk_eff


@functools.partial(jax.jit, static_argnames=("tk_eff", "tb"))
def pathway_regression(x, params, *, tk_eff, tb=256):
    """x: [B, F] float; params from prepare_pathway_params (same tk)."""
    B, F = x.shape
    f_pad, H1 = params["w1"].shape
    H2 = params["w2"].shape[1]
    H3 = params["b3"].shape[1]

    assert f_pad % tk_eff == 0, (f_pad, tk_eff)
    n_k = f_pad // tk_eff
    assert f_pad - tk_eff < F <= f_pad, (F, f_pad, tk_eff)

    tb_eff, n_b = _batch_tiling(B, tb)
    grid = (n_b, n_k)

    kernel = functools.partial(_pathway_kernel, feat=F, tk=tk_eff)

    return pl.pallas_call(
        kernel,
        out_shape=jax.ShapeDtypeStruct((B, H3), x.dtype),
        grid_spec=pltpu.PrefetchScalarGridSpec(
            num_scalar_prefetch=0,
            grid=grid,
            in_specs=[
                # x streamed in its native dtype (no wrapper cast/pad pass).
                pl.BlockSpec((tb_eff, tk_eff), lambda b, k: (b, k)),
                # W1: whole-array resident block (constant index -> one DMA).
                pl.BlockSpec((f_pad, H1), lambda b, k: (0, 0)),
                pl.BlockSpec((1, H1), lambda b, k: (0, 0)),    # b1
                pl.BlockSpec((H1, H2), lambda b, k: (0, 0)),   # W2
                pl.BlockSpec((1, H2), lambda b, k: (0, 0)),    # b2
                pl.BlockSpec((1, H2), lambda b, k: (0, 0)),    # W3 row
                pl.BlockSpec((1, H3), lambda b, k: (0, 0)),    # b3
            ],
            out_specs=pl.BlockSpec((tb_eff, H3), lambda b, k: (b, 0)),
            scratch_shapes=[pltpu.VMEM((tb_eff, H1), jnp.float32)],
        ),
        compiler_params=pltpu.CompilerParams(
            # Batch axis parallel (shards across v7x's 2 TCs), reduction last.
            dimension_semantics=("parallel", "arbitrary"),
            # Working set at defaults (tb=256, tk=8576, f32 x) ~22 MiB;
            # 48 MiB leaves headroom and stays under v7x's 64 MiB physical.
            vmem_limit_bytes=48 * 1024 * 1024,
        ),
    )(x, params["w1"], params["b1"], params["w2"], params["b2"],
      params["w3r"], params["b3"])


def _reference(x, w1, b1, w2, b2, w3, b3):
    h1 = jnp.maximum(x @ w1 + b1[None, :], 0.0)
    h2 = jnp.maximum(h1 @ w2 + b2[None, :], 0.0)
    return h2 @ w3 + b3[None, :]


if __name__ == "__main__":
    # Small deterministic shapes consistent with the module (num_features
    # shrunk from 17052; hidden dims 64/32/1 are fixed by the definition).
    # B and F are deliberately NOT multiples of 8/128 so the uneven-grid +
    # in-kernel masking paths used for F=17052 are exercised.
    F = 700
    H1, H2, H3 = 64, 32, 1

    key = jax.random.PRNGKey(0)
    kx, k1, k2, k3, kb1, kb2, kb3 = jax.random.split(key, 7)

    # Weights stored as (in, out); PyTorch Linear stores (out, in) and
    # transposes -- equivalent under this deterministic synthetic init.
    w1 = jax.random.normal(k1, (F, H1), jnp.float32) * (1.0 / jnp.sqrt(F))
    b1 = jax.random.normal(kb1, (H1,), jnp.float32) * 0.01
    w2 = jax.random.normal(k2, (H1, H2), jnp.float32) * (1.0 / jnp.sqrt(H1))
    b2 = jax.random.normal(kb2, (H2,), jnp.float32) * 0.01
    w3 = jax.random.normal(k3, (H2, H3), jnp.float32) * (1.0 / jnp.sqrt(H2))
    b3 = jax.random.normal(kb3, (H3,), jnp.float32) * 0.01

    # TODO(synk): nn.Dropout() is stochastic only in PyTorch training mode;
    # this kernel implements eval-mode (identity) dropout, matching inference.

    # Case 1: defaults -> single K tile, single batch tile, ragged F and B.
    B1 = 10
    x1 = jax.random.normal(kx, (B1, F), jnp.float32)
    params, tk_eff = prepare_pathway_params(w1, b1, w2, b2, w3, b3)
    out1 = jax.block_until_ready(pathway_regression(x1, params, tk_eff=tk_eff))
    ref1 = _reference(x1, w1, b1, w2, b2, w3, b3)
    assert out1.shape == (B1, H3), out1.shape
    # bf16 streaming of x/W1 with f32 accumulation -> loose-ish tolerance.
    assert jnp.allclose(out1, ref1, atol=5e-2, rtol=5e-2), "case 1 mismatch"

    # Case 2: multiple K tiles + multiple batch tiles (f32 accumulator carry,
    # resident-W1 slicing, K-tail mask and batch overhang all exercised).
    B2 = 100
    x2 = jax.random.normal(kx, (B2, F), jnp.float32)
    params2, tk_eff2 = prepare_pathway_params(w1, b1, w2, b2, w3, b3, tk=256)
    out2 = jax.block_until_ready(
        pathway_regression(x2, params2, tk_eff=tk_eff2))
    ref2 = _reference(x2, w1, b1, w2, b2, w3, b3)
    assert out2.shape == (B2, H3), out2.shape
    assert jnp.allclose(out2, ref2, atol=5e-2, rtol=5e-2), "case 2 mismatch"

    print("KERNEL_OK")
</pallas_src>

<mosaic_0001>
module attributes {stable_mosaic.version = 11 : i64} {
  func.func @_pathway_kernel(%arg0: i32, %arg1: i32, %arg2: memref<16x768xf32, #tpu.memory_space<vmem>>, %arg3: memref<768x64xbf16, #tpu.memory_space<vmem>>, %arg4: memref<1x64xf32, #tpu.memory_space<vmem>>, %arg5: memref<64x32xf32, #tpu.memory_space<vmem>>, %arg6: memref<1x32xf32, #tpu.memory_space<vmem>>, %arg7: memref<1x32xf32, #tpu.memory_space<vmem>>, %arg8: memref<1x1xf32, #tpu.memory_space<vmem>>, %arg9: memref<16x1xf32, #tpu.memory_space<vmem>>, %arg10: memref<16x64xf32, #tpu.memory_space<vmem>>) attributes {dimension_semantics = [#tpu.dimension_semantics<parallel>, #tpu.dimension_semantics<arbitrary>], iteration_bounds = array<i64: 1, 1>, scalar_prefetch = 0 : i64, scratch_operands = 1 : i64, tpu.core_type = #tpu.core_type<tc>, window_params = [{transform_indices = @transform_0, window_bounds = array<i64: 16, 768>}, {pipeline_mode = #tpu.pipeline_mode<synchronous>, transform_indices = @transform_1, window_bounds = array<i64: 768, 64>}, {pipeline_mode = #tpu.pipeline_mode<synchronous>, transform_indices = @transform_2, window_bounds = array<i64: 1, 64>}, {pipeline_mode = #tpu.pipeline_mode<synchronous>, transform_indices = @transform_3, window_bounds = array<i64: 64, 32>}, {pipeline_mode = #tpu.pipeline_mode<synchronous>, transform_indices = @transform_4, window_bounds = array<i64: 1, 32>}, {pipeline_mode = #tpu.pipeline_mode<synchronous>, transform_indices = @transform_5, window_bounds = array<i64: 1, 32>}, {pipeline_mode = #tpu.pipeline_mode<synchronous>, transform_indices = @transform_6, window_bounds = array<i64: 1, 1>}, {transform_indices = @transform_7, window_bounds = array<i64: 16, 1>}]} {
    %c0_i32 = arith.constant 0 : i32
    %0 = arith.cmpi eq, %arg1, %c0_i32 : i32
    %1 = arith.extui %0 : i1 to i32
    %c0_i32_0 = arith.constant 0 : i32
    %2 = arith.cmpi ne, %1, %c0_i32_0 : i32
    scf.if %2 {
      %cst_11 = arith.constant 0.000000e+00 : f32
      %23 = vector.broadcast %cst_11 : f32 to vector<16x64xf32>
      %c0_12 = arith.constant 0 : index
      %c0_13 = arith.constant 0 : index
      %24 = vector.load %arg10[%c0_12, %c0_13] : memref<16x64xf32, #tpu.memory_space<vmem>>, vector<16x64xf32>
      tpu.vector_store %arg10[%c0_12, %c0_13], %23 {strides = array<i32>} : memref<16x64xf32, #tpu.memory_space<vmem>>, vector<16x64xf32>,
    } else {
    }
    %c0 = arith.constant 0 : index
    %c0_1 = arith.constant 0 : index
    %3 = vector.load %arg2[%c0, %c0_1] : memref<16x768xf32, #tpu.memory_space<vmem>>, vector<16x768xf32>
    %c768_i32 = arith.constant 768 : i32
    %4 = arith.muli %arg1, %c768_i32 : i32
    %c700_i32 = arith.constant 700 : i32
    %5 = arith.subi %c700_i32, %4 : i32
    %6 = tpu.iota {dimensions = array<i32: 1>} : vector<16x768xi32>
    %7 = vector.broadcast %5 : i32 to vector<16x768xi32>
    %8 = arith.cmpi slt, %6, %7 : vector<16x768xi32>
    %cst = arith.constant 0.000000e+00 : f32
    %9 = vector.broadcast %cst : f32 to vector<16x768xf32>
    %10 = arith.select %8, %3, %9 : vector<16x768xi1>, vector<16x768xf32>
    %11 = arith.truncf %10 : vector<16x768xf32> to vector<16x768xbf16>
    %c768_i32_2 = arith.constant 768 : i32
    %12 = arith.muli %arg1, %c768_i32_2 : i32
    %13 = tpu.assume_multiple %12, 128 : i32
    %14 = arith.index_cast %13 : i32 to index
    %c0_3 = arith.constant 0 : index
    %15 = vector.load %arg3[%14, %c0_3] : memref<768x64xbf16, #tpu.memory_space<vmem>>, vector<768x64xbf16>
    %c0_4 = arith.constant 0 : index
    %c0_5 = arith.constant 0 : index
    %16 = vector.load %arg10[%c0_4, %c0_5] : memref<16x64xf32, #tpu.memory_space<vmem>>, vector<16x64xf32>
    %cst_6 = arith.constant dense<0.000000e+00> : vector<16x64xf32>
    %17 = tpu.matmul %11, %15, %cst_6 {dimension_numbers = #tpu.dot_dimension_numbers<[1], [0], [0], [1], [0, 0, 1, 1], [], []>} : vector<16x768xbf16>, vector<768x64xbf16>, vector<16x64xf32> -> vector<16x64xf32>
    %18 = arith.addf %16, %17 : vector<16x64xf32>
    %c0_7 = arith.constant 0 : index
    %c0_8 = arith.constant 0 : index
    %19 = vector.load %arg10[%c0_7, %c0_8] : memref<16x64xf32, #tpu.memory_space<vmem>>, vector<16x64xf32>
    tpu.vector_store %arg10[%c0_7, %c0_8], %18 {strides = array<i32>} : memref<16x64xf32, #tpu.memory_space<vmem>>, vector<16x64xf32>,
    %c0_i32_9 = arith.constant 0 : i32
    %20 = arith.cmpi eq, %arg1, %c0_i32_9 : i32
    %21 = arith.extui %20 : i1 to i32
    %c0_i32_10 = arith.constant 0 : i32
    %22 = arith.cmpi ne, %21, %c0_i32_10 : i32
    scf.if %22 {
      %c0_11 = arith.constant 0 : index
      %c0_12 = arith.constant 0 : index
      %23 = vector.load %arg10[%c0_11, %c0_12] : memref<16x64xf32, #tpu.memory_space<vmem>>, vector<16x64xf32>
      %c0_13 = arith.constant 0 : index
      %c0_14 = arith.constant 0 : index
      %24 = vector.load %arg4[%c0_13, %c0_14] : memref<1x64xf32, #tpu.memory_space<vmem>>, vector<1x64xf32>
      %25 = vector.broadcast %24 : vector<1x64xf32> to vector<16x64xf32>
      %26 = arith.addf %23, %25 : vector<16x64xf32>
      %cst_15 = arith.constant 0.000000e+00 : f32
      %27 = vector.broadcast %cst_15 : f32 to vector<16x64xf32>
      %28 = arith.maximumf %26, %27 : vector<16x64xf32>
      %c0_16 = arith.constant 0 : index
      %c0_17 = arith.constant 0 : index
      %29 = vector.load %arg5[%c0_16, %c0_17] : memref<64x32xf32, #tpu.memory_space<vmem>>, vector<64x32xf32>
      %cst_18 = arith.constant dense<0.000000e+00> : vector<16x32xf32>
      %30 = tpu.matmul %28, %29, %cst_18 {dimension_numbers = #tpu.dot_dimension_numbers<[1], [0], [0], [1], [0, 0, 1, 1], [], []>} : vector<16x64xf32>, vector<64x32xf32>, vector<16x32xf32> -> vector<16x32xf32>
      %c0_19 = arith.constant 0 : index
      %c0_20 = arith.constant 0 : index
      %31 = vector.load %arg6[%c0_19, %c0_20] : memref<1x32xf32, #tpu.memory_space<vmem>>, vector<1x32xf32>
      %32 = vector.broadcast %31 : vector<1x32xf32> to vector<16x32xf32>
      %33 = arith.addf %30, %32 : vector<16x32xf32>
      %cst_21 = arith.constant 0.000000e+00 : f32
      %34 = vector.broadcast %cst_21 : f32 to vector<16x32xf32>
      %35 = arith.maximumf %33, %34 : vector<16x32xf32>
      %c0_22 = arith.constant 0 : index
      %c0_23 = arith.constant 0 : index
      %36 = vector.load %arg7[%c0_22, %c0_23] : memref<1x32xf32, #tpu.memory_space<vmem>>, vector<1x32xf32>
      %37 = vector.broadcast %36 : vector<1x32xf32> to vector<16x32xf32>
      %38 = arith.mulf %35, %37 : vector<16x32xf32>
      %cst_24 = arith.constant dense<0.000000e+00> : vector<16xf32>
      %39 = vector.multi_reduction <add>, %38, %cst_24 [1] : vector<16x32xf32> to vector<16xf32>
      %40 = vector.shape_cast %39 : vector<16xf32> to vector<16x1xf32>
      %c0_25 = arith.constant 0 : index
      %c0_26 = arith.constant 0 : index
      %41 = vector.load %arg8[%c0_25, %c0_26] : memref<1x1xf32, #tpu.memory_space<vmem>>, vector<1x1xf32>
      %42 = vector.broadcast %41 : vector<1x1xf32> to vector<16x1xf32>
      %43 = arith.addf %40, %42 : vector<16x1xf32>
      %c0_27 = arith.constant 0 : index
      %c0_28 = arith.constant 0 : index
      %44 = vector.load %arg9[%c0_27, %c0_28] : memref<16x1xf32, #tpu.memory_space<vmem>>, vector<16x1xf32>
      tpu.vector_store %arg9[%c0_27, %c0_28], %43 {strides = array<i32>} : memref<16x1xf32, #tpu.memory_space<vmem>>, vector<16x1xf32>,
    } else {
    }
    return
  }
  func.func @transform_0(%arg0: i32, %arg1: i32) -> (i32, i32) {
    %c0_i32 = arith.constant 0 : i32
    return %arg0, %arg1 : i32, i32
  }
  func.func @transform_1(%arg0: i32, %arg1: i32) -> (i32, i32) {
    %c0_i32 = arith.constant 0 : i32
    %c0_i32_0 = arith.constant 0 : i32
    %c0_i32_1 = arith.constant 0 : i32
    return %c0_i32, %c0_i32_0 : i32, i32
  }
  func.func @transform_2(%arg0: i32, %arg1: i32) -> (i32, i32) {
    %c0_i32 = arith.constant 0 : i32
    %c0_i32_0 = arith.constant 0 : i32
    %c0_i32_1 = arith.constant 0 : i32
    return %c0_i32, %c0_i32_0 : i32, i32
  }
  func.func @transform_3(%arg0: i32, %arg1: i32) -> (i32, i32) {
    %c0_i32 = arith.constant 0 : i32
    %c0_i32_0 = arith.constant 0 : i32
    %c0_i32_1 = arith.constant 0 : i32
    return %c0_i32, %c0_i32_0 : i32, i32
  }
  func.func @transform_4(%arg0: i32, %arg1: i32) -> (i32, i32) {
    %c0_i32 = arith.constant 0 : i32
    %c0_i32_0 = arith.constant 0 : i32
    %c0_i32_1 = arith.constant 0 : i32
    return %c0_i32, %c0_i32_0 : i32, i32
  }
  func.func @transform_5(%arg0: i32, %arg1: i32) -> (i32, i32) {
    %c0_i32 = arith.constant 0 : i32
    %c0_i32_0 = arith.constant 0 : i32
    %c0_i32_1 = arith.constant 0 : i32
    return %c0_i32, %c0_i32_0 : i32, i32
  }
  func.func @transform_6(%arg0: i32, %arg1: i32) -> (i32, i32) {
    %c0_i32 = arith.constant 0 : i32
    %c0_i32_0 = arith.constant 0 : i32
    %c0_i32_1 = arith.constant 0 : i32
    return %c0_i32, %c0_i32_0 : i32, i32
  }
  func.func @transform_7(%arg0: i32, %arg1: i32) -> (i32, i32) {
    %c0_i32 = arith.constant 0 : i32
    %c0_i32_0 = arith.constant 0 : i32
    return %arg0, %c0_i32 : i32, i32
  }
}

</mosaic_0001>

<llo_original>
// kernel: pathway_regression.1
$region0: #{pathway_regression.1}
  #allocation0 [shape = 'u32[]', space=smem, size = 0x4, offset = 0x4, fixed_abs, tag = 'smem constant byte address 0x4 - core index']
  #allocation1 [shape = 'u32[144,128]{1,0:T(1,128)}', space=vmem, size = 0x12000, scoped, tag = 'internal scratch']
  #allocation2 [shape = 'f32[16,64]{1,0:T(8,128)}', space=vmem, size = 0x2000, scoped, tag = 'scratch operand']
  #allocation3 [shape = 'f32[1,1]{1,0:T(1,128)S(1)}', space=vmem, size = 0x200, scoped, tag = 'scoped memory for pathway_regression.1']
  %s0 = inlined_call_operand.vmem [shape: f32[10,700], index: 0, kind: input, shape index: {}]
  %s1 = inlined_call_operand.vmem [shape: bf16[768,64], index: 1, kind: input, shape index: {}]
  %s2 = inlined_call_operand.vmem [shape: f32[1,64], index: 2, kind: input, shape index: {}]
  %s3 = inlined_call_operand.vmem [shape: f32[64,32], index: 3, kind: input, shape index: {}]
  %s4 = inlined_call_operand.vmem [shape: f32[1,32], index: 4, kind: input, shape index: {}]
  %s5 = inlined_call_operand.vmem [shape: f32[1,32], index: 5, kind: input, shape index: {}]
  %s6 = inlined_call_operand.<no memory space> [shape: f32[1,1], index: 6, kind: input, shape index: {}]
  %s7 = inlined_call_operand.vmem [shape: f32[10,1], index: 7, kind: output, shape index: {}]
  %s8 = sld [smem:[#allocation0]]
  $region46: #{pathway_regression.1} parent=0
    _
  %s10 = ssub.s32 1, %s8
  %s11 = scalar_select 0, %s10, %s8
  %v12 = vstv %s6
  %13 = vst [vmem:[#allocation3] sm:$0x1] %v12
  // Predicated region
  $region2: #{pathway_regression.1} parent=0 // pred_check
    _
  $region3: #{pathway_regression.1} parent=0 // pred_check_branch
    %15 = sbr.rel (0) target = $region5
  $region4: #{pathway_regression.1} parent=0 // pred_region
    _
  $region5: #{pathway_regression.1} parent=0 // pred_fallthru
    _
  // Predicated region
  $region6: #{pathway_regression.1} parent=0 // pred_check
    _
  $region7: #{pathway_regression.1} parent=0 // pred_check_branch
    %17 = sbr.rel (0) target = $region9
  $region8: #{pathway_regression.1} parent=0 // pred_region
    _
  $region9: #{pathway_regression.1} parent=0 // pred_fallthru
    _
  // Predicated region
  $region10: #{pathway_regression.1} parent=0 // pred_check
    _
  $region11: #{pathway_regression.1} parent=0 // pred_check_branch
    %19 = sbr.rel (0) target = $region13
  $region12: #{pathway_regression.1} parent=0 // pred_region
    _
  $region13: #{pathway_regression.1} parent=0 // pred_fallthru
    _
  // Predicated region
  $region14: #{pathway_regression.1} parent=0 // pred_check
    _
  $region15: #{pathway_regression.1} parent=0 // pred_check_branch
    %21 = sbr.rel (0) target = $region17
  $region16: #{pathway_regression.1} parent=0 // pred_region
    _
  $region17: #{pathway_regression.1} parent=0 // pred_fallthru
    _
  // Predicated region
  $region18: #{pathway_regression.1} parent=0 // pred_check
    _
  $region19: #{pathway_regression.1} parent=0 // pred_check_branch
    %23 = sbr.rel (0) target = $region21
  $region20: #{pathway_regression.1} parent=0 // pred_region
    _
  $region21: #{pathway_regression.1} parent=0 // pred_fallthru
    _
  // Predicated region
  $region22: #{pathway_regression.1} parent=0 // pred_check
    _
  $region23: #{pathway_regression.1} parent=0 // pred_check_branch
    %25 = sbr.rel (0) target = $region25
  $region24: #{pathway_regression.1} parent=0 // pred_region
    _
  $region25: #{pathway_regression.1} parent=0 // pred_fallthru
    _
  // Predicated region
  $region26: #{pathway_regression.1} parent=0 // pred_check
    _
  $region27: #{pathway_regression.1} parent=0 // pred_check_branch
    %27 = sbr.rel (0) target = $region29
  $region28: #{pathway_regression.1} parent=0 // pred_region
    _
  $region29: #{pathway_regression.1} parent=0 // pred_fallthru
    _
  %p29 = scmp.eq.s32.totalorder 0, 0
  // Predicated region
  $region30: #{pathway_regression.1} parent=0 // pred_check
    %p30 = pneg %p29
  $region31: #{pathway_regression.1} parent=0 // pred_check_branch
    %32 = sbr.rel (%p30) target = $region33
  $region32: #{pathway_regression.1} parent=0 // pred_region
    %vm33 = vcmask 523264
    %34 = vst.msk [vmem:[#allocation2] sm:$0xff] %vm33, 0.0
    %35 = vst.msk [vmem:[#allocation2 + $0x8] sm:$0xff] %vm33, 0.0
  $region33: #{pathway_regression.1} parent=0 // pred_fallthru
    _
  %v36 = vld [vmem:[%s0] sm:$0xff]
  %v37 = vld [vmem:[%s0 + $0x8] sm:$0xff]
  %v38 = vld [vmem:[%s0 + $0x10] sm:$0xff]
  %v39 = vld [vmem:[%s0 + $0x18] sm:$0xff]
  %v40 = vld [vmem:[%s0 + $0x20] sm:$0xff]
  %v41 = vld [vmem:[%s0 + $0x28] sm:$0xff]
  %v42 = vld [vmem:[%s0 + $0x30] sm:$0xff]
  %v43 = vld [vmem:[%s0 + $0x38] sm:$0xff]
  %v44 = vld [vmem:[%s0 + $0x40] sm:$0xff]
  %v45 = vld [vmem:[%s0 + $0x48] sm:$0xff]
  %v46 = vld [vmem:[%s0 + $0x50] sm:$0xff]
  %v47 = vld [vmem:[%s0 + $0x58] sm:$0xff]
  %s48 = smul.u32 0, 768
  %s49 = ssub.s32 700, %s48
  %v50 = vlaneseq
  %v51 = vand.u32 %v50, 127
  %v52 = vadd.s32 %v51, 128
  %v53 = vadd.s32 %v51, 256
  %v54 = vadd.s32 %v51, 384
  %v55 = vadd.s32 %v51, 512
  %v56 = vadd.s32 %v51, 640
  %v57 = vstv %s49
  %vm58 = vcmp.lt.s32.totalorder %v51, %v57
  %vm59 = vcmp.lt.s32.totalorder %v52, %v57
  %vm60 = vcmp.lt.s32.totalorder %v53, %v57
  %vm61 = vcmp.lt.s32.totalorder %v54, %v57
  %vm62 = vcmp.lt.s32.totalorder %v55, %v57
  %vm63 = vcmp.lt.s32.totalorder %v56, %v57
  %v64 = vsel %vm58, %v36, 0.0
  %v65 = vsel %vm59, %v37, 0.0
  %v66 = vsel %vm60, %v38, 0.0
  %v67 = vsel %vm61, %v39, 0.0
  %v68 = vsel %vm62, %v40, 0.0
  %v69 = vsel %vm63, %v41, 0.0
  %v70 = vsel %vm58, %v42, 0.0
  %v71 = vsel %vm59, %v43, 0.0
  %v72 = vsel %vm60, %v44, 0.0
  %v73 = vsel %vm61, %v45, 0.0
  %v74 = vsel %vm62, %v46, 0.0
  %v75 = vsel %vm63, %v47, 0.0
  %v76 = vpack.c.bf16 %v70, %v64
  %v77 = vpack.c.bf16 %v71, %v65
  %v78 = vpack.c.bf16 %v72, %v66
  %v79 = vpack.c.bf16 %v73, %v67
  %v80 = vpack.c.bf16 %v74, %v68
  %v81 = vpack.c.bf16 %v75, %v69
  %s82 = sshra.s32 %s48, 3
  %s83 = sand.u32 %s48, 7
  %s84 = smul.addr %s82, 4
  %s85 = scalar_lea.vmem %s1, %s84
  %v86 = vld [vmem:[%s85] sm:$0xf]
  %v87 = vld [vmem:[%s85 + $0x4] sm:$0xf]
  %v88 = vld [vmem:[%s85 + $0x8] sm:$0xf]
  %v89 = vld [vmem:[%s85 + $0xc] sm:$0xf]
  %v90 = vld [vmem:[%s85 + $0x10] sm:$0xf]
  %v91 = vld [vmem:[%s85 + $0x14] sm:$0xf]
  %v92 = vld [vmem:[%s85 + $0x18] sm:$0xf]
  %v93 = vld [vmem:[%s85 + $0x1c] sm:$0xf]
  %v94 = vld [vmem:[%s85 + $0x20] sm:$0xf]
  %v95 = vld [vmem:[%s85 + $0x24] sm:$0xf]
  %v96 = vld [vmem:[%s85 + $0x28] sm:$0xf]
  %v97 = vld [vmem:[%s85 + $0x2c] sm:$0xf]
  %v98 = vld [vmem:[%s85 + $0x30] sm:$0xf]
  %v99 = vld [vmem:[%s85 + $0x34] sm:$0xf]
  %v100 = vld [vmem:[%s85 + $0x38] sm:$0xf]
  %v101 = vld [vmem:[%s85 + $0x3c] sm:$0xf]
  %v102 = vld [vmem:[%s85 + $0x40] sm:$0xf]
  %v103 = vld [vmem:[%s85 + $0x44] sm:$0xf]
  %v104 = vld [vmem:[%s85 + $0x48] sm:$0xf]
  %v105 = vld [vmem:[%s85 + $0x4c] sm:$0xf]
  %v106 = vld [vmem:[%s85 + $0x50] sm:$0xf]
  %v107 = vld [vmem:[%s85 + $0x54] sm:$0xf]
  %v108 = vld [vmem:[%s85 + $0x58] sm:$0xf]
  %v109 = vld [vmem:[%s85 + $0x5c] sm:$0xf]
  %v110 = vld [vmem:[%s85 + $0x60] sm:$0xf]
  %v111 = vld [vmem:[%s85 + $0x64] sm:$0xf]
  %v112 = vld [vmem:[%s85 + $0x68] sm:$0xf]
  %v113 = vld [vmem:[%s85 + $0x6c] sm:$0xf]
  %v114 = vld [vmem:[%s85 + $0x70] sm:$0xf]
  %v115 = vld [vmem:[%s85 + $0x74] sm:$0xf]
  %v116 = vld [vmem:[%s85 + $0x78] sm:$0xf]
  %v117 = vld [vmem:[%s85 + $0x7c] sm:$0xf]
  %v118 = vld [vmem:[%s85 + $0x80] sm:$0xf]
  %v119 = vld [vmem:[%s85 + $0x84] sm:$0xf]
  %v120 = vld [vmem:[%s85 + $0x88] sm:$0xf]
  %v121 = vld [vmem:[%s85 + $0x8c] sm:$0xf]
  %v122 = vld [vmem:[%s85 + $0x90] sm:$0xf]
  %v123 = vld [vmem:[%s85 + $0x94] sm:$0xf]
  %v124 = vld [vmem:[%s85 + $0x98] sm:$0xf]
  %v125 = vld [vmem:[%s85 + $0x9c] sm:$0xf]
  %v126 = vld [vmem:[%s85 + $0xa0] sm:$0xf]
  %v127 = vld [vmem:[%s85 + $0xa4] sm:$0xf]
  %v128 = vld [vmem:[%s85 + $0xa8] sm:$0xf]
  %v129 = vld [vmem:[%s85 + $0xac] sm:$0xf]
  %v130 = vld [vmem:[%s85 + $0xb0] sm:$0xf]
  %v131 = vld [vmem:[%s85 + $0xb4] sm:$0xf]
  %v132 = vld [vmem:[%s85 + $0xb8] sm:$0xf]
  %v133 = vld [vmem:[%s85 + $0xbc] sm:$0xf]
  %v134 = vld [vmem:[%s85 + $0xc0] sm:$0xf]
  %v135 = vld [vmem:[%s85 + $0xc4] sm:$0xf]
  %v136 = vld [vmem:[%s85 + $0xc8] sm:$0xf]
  %v137 = vld [vmem:[%s85 + $0xcc] sm:$0xf]
  %v138 = vld [vmem:[%s85 + $0xd0] sm:$0xf]
  %v139 = vld [vmem:[%s85 + $0xd4] sm:$0xf]
  %v140 = vld [vmem:[%s85 + $0xd8] sm:$0xf]
  %v141 = vld [vmem:[%s85 + $0xdc] sm:$0xf]
  %v142 = vld [vmem:[%s85 + $0xe0] sm:$0xf]
  %v143 = vld [vmem:[%s85 + $0xe4] sm:$0xf]
  %v144 = vld [vmem:[%s85 + $0xe8] sm:$0xf]
  %v145 = vld [vmem:[%s85 + $0xec] sm:$0xf]
  %v146 = vld [vmem:[%s85 + $0xf0] sm:$0xf]
  %v147 = vld [vmem:[%s85 + $0xf4] sm:$0xf]
  %v148 = vld [vmem:[%s85 + $0xf8] sm:$0xf]
  %v149 = vld [vmem:[%s85 + $0xfc] sm:$0xf]
  %v150 = vld [vmem:[%s85 + $0x100] sm:$0xf]
  %v151 = vld [vmem:[%s85 + $0x104] sm:$0xf]
  %v152 = vld [vmem:[%s85 + $0x108] sm:$0xf]
  %v153 = vld [vmem:[%s85 + $0x10c] sm:$0xf]
  %v154 = vld [vmem:[%s85 + $0x110] sm:$0xf]
  %v155 = vld [vmem:[%s85 + $0x114] sm:$0xf]
  %v156 = vld [vmem:[%s85 + $0x118] sm:$0xf]
  %v157 = vld [vmem:[%s85 + $0x11c] sm:$0xf]
  %v158 = vld [vmem:[%s85 + $0x120] sm:$0xf]
  %v159 = vld [vmem:[%s85 + $0x124] sm:$0xf]
  %v160 = vld [vmem:[%s85 + $0x128] sm:$0xf]
  %v161 = vld [vmem:[%s85 + $0x12c] sm:$0xf]
  %v162 = vld [vmem:[%s85 + $0x130] sm:$0xf]
  %v163 = vld [vmem:[%s85 + $0x134] sm:$0xf]
  %v164 = vld [vmem:[%s85 + $0x138] sm:$0xf]
  %v165 = vld [vmem:[%s85 + $0x13c] sm:$0xf]
  %v166 = vld [vmem:[%s85 + $0x140] sm:$0xf]
  %v167 = vld [vmem:[%s85 + $0x144] sm:$0xf]
  %v168 = vld [vmem:[%s85 + $0x148] sm:$0xf]
  %v169 = vld [vmem:[%s85 + $0x14c] sm:$0xf]
  %v170 = vld [vmem:[%s85 + $0x150] sm:$0xf]
  %v171 = vld [vmem:[%s85 + $0x154] sm:$0xf]
  %v172 = vld [vmem:[%s85 + $0x158] sm:$0xf]
  %v173 = vld [vmem:[%s85 + $0x15c] sm:$0xf]
  %v174 = vld [vmem:[%s85 + $0x160] sm:$0xf]
  %v175 = vld [vmem:[%s85 + $0x164] sm:$0xf]
  %v176 = vld [vmem:[%s85 + $0x168] sm:$0xf]
  %v177 = vld [vmem:[%s85 + $0x16c] sm:$0xf]
  %v178 = vld [vmem:[%s85 + $0x170] sm:$0xf]
  %v179 = vld [vmem:[%s85 + $0x174] sm:$0xf]
  %v180 = vld [vmem:[%s85 + $0x178] sm:$0xf]
  %v181 = vld [vmem:[%s85 + $0x17c] sm:$0xf]
  %v182 = vld [vmem:[#allocation2] sm:$0xff]
  %v183 = vld [vmem:[#allocation2 + $0x8] sm:$0xff]
  %v280 = vunpack.c.l.b16 %v86
  %v281 = vunpack.c.l.b16 %v87
  %v282 = vunpack.c.l.b16 %v88
  %v283 = vunpack.c.l.b16 %v89
  %v284 = vunpack.c.l.b16 %v90
  %v285 = vunpack.c.l.b16 %v91
  %v286 = vunpack.c.l.b16 %v92
  %v287 = vunpack.c.l.b16 %v93
  %v288 = vunpack.c.l.b16 %v94
  %v289 = vunpack.c.l.b16 %v95
  %v290 = vunpack.c.l.b16 %v96
  %v291 = vunpack.c.l.b16 %v97
  %v292 = vunpack.c.l.b16 %v98
  %v293 = vunpack.c.l.b16 %v99
  %v294 = vunpack.c.l.b16 %v100
  %v295 = vunpack.c.l.b16 %v101
  %v296 = vunpack.c.l.b16 %v102
  %v297 = vunpack.c.l.b16 %v103
  %v298 = vunpack.c.l.b16 %v104
  %v299 = vunpack.c.l.b16 %v105
  %v300 = vunpack.c.l.b16 %v106
  %v301 = vunpack.c.l.b16 %v107
  %v302 = vunpack.c.l.b16 %v108
  %v303 = vunpack.c.l.b16 %v109
  %v304 = vunpack.c.l.b16 %v110
  %v305 = vunpack.c.l.b16 %v111
  %v306 = vunpack.c.l.b16 %v112
  %v307 = vunpack.c.l.b16 %v113
  %v308 = vunpack.c.l.b16 %v114
  %v309 = vunpack.c.l.b16 %v115
  %v310 = vunpack.c.l.b16 %v116
  %v311 = vunpack.c.l.b16 %v117
  %v312 = vunpack.c.l.b16 %v118
  %v313 = vunpack.c.l.b16 %v119
  %v314 = vunpack.c.l.b16 %v120
  %v315 = vunpack.c.l.b16 %v121
  %v316 = vunpack.c.l.b16 %v122
  %v317 = vunpack.c.l.b16 %v123
  %v318 = vunpack.c.l.b16 %v124
  %v319 = vunpack.c.l.b16 %v125
  %v320 = vunpack.c.l.b16 %v126
  %v321 = vunpack.c.l.b16 %v127
  %v322 = vunpack.c.l.b16 %v128
  %v323 = vunpack.c.l.b16 %v129
  %v324 = vunpack.c.l.b16 %v130
  %v325 = vunpack.c.l.b16 %v131
  %v326 = vunpack.c.l.b16 %v132
  %v327 = vunpack.c.l.b16 %v133
  %v328 = vunpack.c.l.b16 %v134
  %v329 = vunpack.c.l.b16 %v135
  %v330 = vunpack.c.l.b16 %v136
  %v331 = vunpack.c.l.b16 %v137
  %v332 = vunpack.c.l.b16 %v138
  %v333 = vunpack.c.l.b16 %v139
  %v334 = vunpack.c.l.b16 %v140
  %v335 = vunpack.c.l.b16 %v141
  %v336 = vunpack.c.l.b16 %v142
  %v337 = vunpack.c.l.b16 %v143
  %v338 = vunpack.c.l.b16 %v144
  %v339 = vunpack.c.l.b16 %v145
  %v340 = vunpack.c.l.b16 %v146
  %v341 = vunpack.c.l.b16 %v147
  %v342 = vunpack.c.l.b16 %v148
  %v343 = vunpack.c.l.b16 %v149
  %v344 = vunpack.c.l.b16 %v150
  %v345 = vunpack.c.l.b16 %v151
  %v346 = vunpack.c.l.b16 %v152
  %v347 = vunpack.c.l.b16 %v153
  %v348 = vunpack.c.l.b16 %v154
  %v349 = vunpack.c.l.b16 %v155
  %v350 = vunpack.c.l.b16 %v156
  %v351 = vunpack.c.l.b16 %v157
  %v352 = vunpack.c.l.b16 %v158
  %v353 = vunpack.c.l.b16 %v159
  %v354 = vunpack.c.l.b16 %v160
  %v355 = vunpack.c.l.b16 %v161
  %v356 = vunpack.c.l.b16 %v162
  %v357 = vunpack.c.l.b16 %v163
  %v358 = vunpack.c.l.b16 %v164
  %v359 = vunpack.c.l.b16 %v165
  %v360 = vunpack.c.l.b16 %v166
  %v361 = vunpack.c.l.b16 %v167
  %v362 = vunpack.c.l.b16 %v168
  %v363 = vunpack.c.l.b16 %v169
  %v364 = vunpack.c.l.b16 %v170
  %v365 = vunpack.c.l.b16 %v171
  %v366 = vunpack.c.l.b16 %v172
  %v367 = vunpack.c.l.b16 %v173
  %v368 = vunpack.c.l.b16 %v174
  %v369 = vunpack.c.l.b16 %v175
  %v370 = vunpack.c.l.b16 %v176
  %v371 = vunpack.c.l.b16 %v177
  %v372 = vunpack.c.l.b16 %v178
  %v373 = vunpack.c.l.b16 %v179
  %v374 = vunpack.c.l.b16 %v180
  %v375 = vunpack.c.l.b16 %v181
  %v376 = vpack.c.b16 %v281, %v280
  %v377 = vpack.c.b16 %v283, %v282
  %v378 = vpack.c.b16 %v285, %v284
  %v379 = vpack.c.b16 %v287, %v286
  %v380 = vpack.c.b16 %v289, %v288
  %v381 = vpack.c.b16 %v291, %v290
  %v382 = vpack.c.b16 %v293, %v292
  %v383 = vpack.c.b16 %v295, %v294
  %v384 = vpack.c.b16 %v297, %v296
  %v385 = vpack.c.b16 %v299, %v298
  %v386 = vpack.c.b16 %v301, %v300
  %v387 = vpack.c.b16 %v303, %v302
  %v388 = vpack.c.b16 %v305, %v304
  %v389 = vpack.c.b16 %v307, %v306
  %v390 = vpack.c.b16 %v309, %v308
  %v391 = vpack.c.b16 %v311, %v310
  %v392 = vpack.c.b16 %v313, %v312
  %v393 = vpack.c.b16 %v315, %v314
  %v394 = vpack.c.b16 %v317, %v316
  %v395 = vpack.c.b16 %v319, %v318
  %v396 = vpack.c.b16 %v321, %v320
  %v397 = vpack.c.b16 %v323, %v322
  %v398 = vpack.c.b16 %v325, %v324
  %v399 = vpack.c.b16 %v327, %v326
  %v400 = vpack.c.b16 %v329, %v328
  %v401 = vpack.c.b16 %v331, %v330
  %v402 = vpack.c.b16 %v333, %v332
  %v403 = vpack.c.b16 %v335, %v334
  %v404 = vpack.c.b16 %v337, %v336
  %v405 = vpack.c.b16 %v339, %v338
  %v406 = vpack.c.b16 %v341, %v340
  %v407 = vpack.c.b16 %v343, %v342
  %v408 = vpack.c.b16 %v345, %v344
  %v409 = vpack.c.b16 %v347, %v346
  %v410 = vpack.c.b16 %v349, %v348
  %v411 = vpack.c.b16 %v351, %v350
  %v412 = vpack.c.b16 %v353, %v352
  %v413 = vpack.c.b16 %v355, %v354
  %v414 = vpack.c.b16 %v357, %v356
  %v415 = vpack.c.b16 %v359, %v358
  %v416 = vpack.c.b16 %v361, %v360
  %v417 = vpack.c.b16 %v363, %v362
  %v418 = vpack.c.b16 %v365, %v364
  %v419 = vpack.c.b16 %v367, %v366
  %v420 = vpack.c.b16 %v369, %v368
  %v421 = vpack.c.b16 %v371, %v370
  %v422 = vpack.c.b16 %v373, %v372
  %v423 = vpack.c.b16 %v375, %v374
  %472 = vmatprep.subr.bf16.mxu0 0
  %473 = vmatpush1.bf16.msra.mxu0 %v376
  %474 = vmatprep.subr.bf16.mxu0 0
  %475 = vmatpush1.bf16.msra.mxu0 %v377
  %476 = vmatprep.subr.bf16.mxu0 0
  %477 = vmatpush1.bf16.msra.mxu0 %v378
  %478 = vmatprep.subr.bf16.mxu0 0
  %479 = vmatpush1.bf16.msra.mxu0 %v379
  %480 = vmatprep.subr.bf16.mxu0 0
  %481 = vmatpush1.bf16.msra.mxu0 %v380
  %482 = vmatprep.subr.bf16.mxu0 0
  %483 = vmatpush1.bf16.msra.mxu0 %v381
  %484 = vmatprep.subr.bf16.mxu0 0
  %485 = vmatpush1.bf16.msra.mxu0 %v382
  %486 = vmatprep.subr.bf16.mxu0 0
  %487 = vmatpush1.bf16.msra.mxu0 %v383
  %488 = vmatprep.subr.bf16.mxu0 0
  %489 = vmatpush1.bf16.msra.mxu0 %v384
  %490 = vmatprep.subr.bf16.mxu0 0
  %491 = vmatpush1.bf16.msra.mxu0 %v385
  %492 = vmatprep.subr.bf16.mxu0 0
  %493 = vmatpush1.bf16.msra.mxu0 %v386
  %494 = vmatprep.subr.bf16.mxu0 0
  %495 = vmatpush1.bf16.msra.mxu0 %v387
  %496 = vmatprep.subr.bf16.mxu0 0
  %497 = vmatpush1.bf16.msra.mxu0 %v388
  %498 = vmatprep.subr.bf16.mxu0 0
  %499 = vmatpush1.bf16.msra.mxu0 %v389
  %500 = vmatprep.subr.bf16.mxu0 0
  %501 = vmatpush1.bf16.msra.mxu0 %v390
  %502 = vmatprep.subr.bf16.mxu0 0
  %503 = vmatpush1.bf16.msra.mxu0 %v391
  %504 = vmatprep.mubr.bf16.mxu0 %v77
  %505 = vmatmul.mubr.bf16.gmra.mrb[0].mxu0 %v76
  %v506 = vpop.f32.mrb[0].mxu0
  %v507 = vadd.f32 0.0, %v506
  %v508 = vpop.f32.mrb[0].mxu0
  %v509 = vpop.f32.mrb[0].mxu0
  %v510 = vadd.f32 0.0, %v509
  %v511 = vpop.f32.mrb[0].mxu0
  %512 = vdwg.mxu0
  %513 = vmatprep.subr.bf16.mxu0 0
  %514 = vmatpush1.bf16.msra.mxu0 %v392
  %515 = vmatprep.subr.bf16.mxu0 0
  %516 = vmatpush1.bf16.msra.mxu0 %v393
  %517 = vmatprep.subr.bf16.mxu0 0
  %518 = vmatpush1.bf16.msra.mxu0 %v394
  %519 = vmatprep.subr.bf16.mxu0 0
  %520 = vmatpush1.bf16.msra.mxu0 %v395
  %521 = vmatprep.subr.bf16.mxu0 0
  %522 = vmatpush1.bf16.msra.mxu0 %v396
  %523 = vmatprep.subr.bf16.mxu0 0
  %524 = vmatpush1.bf16.msra.mxu0 %v397
  %525 = vmatprep.subr.bf16.mxu0 0
  %526 = vmatpush1.bf16.msra.mxu0 %v398
  %527 = vmatprep.subr.bf16.mxu0 0
  %528 = vmatpush1.bf16.msra.mxu0 %v399
  %529 = vmatprep.subr.bf16.mxu0 0
  %530 = vmatpush1.bf16.msra.mxu0 %v400
  %531 = vmatprep.subr.bf16.mxu0 0
  %532 = vmatpush1.bf16.msra.mxu0 %v401
  %533 = vmatprep.subr.bf16.mxu0 0
  %534 = vmatpush1.bf16.msra.mxu0 %v402
  %535 = vmatprep.subr.bf16.mxu0 0
  %536 = vmatpush1.bf16.msra.mxu0 %v403
  %537 = vmatprep.subr.bf16.mxu0 0
  %538 = vmatpush1.bf16.msra.mxu0 %v404
  %539 = vmatprep.subr.bf16.mxu0 0
  %540 = vmatpush1.bf16.msra.mxu0 %v405
  %541 = vmatprep.subr.bf16.mxu0 0
  %542 = vmatpush1.bf16.msra.mxu0 %v406
  %543 = vmatprep.subr.bf16.mxu0 0
  %544 = vmatpush1.bf16.msra.mxu0 %v407
  %545 = vmatprep.mubr.bf16.mxu0 %v79
  %546 = vmatmul.mubr.bf16.gmra.mrb[0].mxu0 %v78
  %v547 = vpop.f32.mrb[0].mxu0
  %v548 = vadd.f32 %v507, %v547
  %v549 = vpop.f32.mrb[0].mxu0
  %v550 = vpop.f32.mrb[0].mxu0
  %v551 = vadd.f32 %v510, %v550
  %v552 = vpop.f32.mrb[0].mxu0
  %553 = vdwg.mxu0
  %554 = vmatprep.subr.bf16.mxu0 0
  %555 = vmatpush1.bf16.msra.mxu0 %v408
  %556 = vmatprep.subr.bf16.mxu0 0
  %557 = vmatpush1.bf16.msra.mxu0 %v409
  %558 = vmatprep.subr.bf16.mxu0 0
  %559 = vmatpush1.bf16.msra.mxu0 %v410
  %560 = vmatprep.subr.bf16.mxu0 0
  %561 = vmatpush1.bf16.msra.mxu0 %v411
  %562 = vmatprep.subr.bf16.mxu0 0
  %563 = vmatpush1.bf16.msra.mxu0 %v412
  %564 = vmatprep.subr.bf16.mxu0 0
  %565 = vmatpush1.bf16.msra.mxu0 %v413
  %566 = vmatprep.subr.bf16.mxu0 0
  %567 = vmatpush1.bf16.msra.mxu0 %v414
  %568 = vmatprep.subr.bf16.mxu0 0
  %569 = vmatpush1.bf16.msra.mxu0 %v415
  %570 = vmatprep.subr.bf16.mxu0 0
  %571 = vmatpush1.bf16.msra.mxu0 %v416
  %572 = vmatprep.subr.bf16.mxu0 0
  %573 = vmatpush1.bf16.msra.mxu0 %v417
  %574 = vmatprep.subr.bf16.mxu0 0
  %575 = vmatpush1.bf16.msra.mxu0 %v418
  %576 = vmatprep.subr.bf16.mxu0 0
  %577 = vmatpush1.bf16.msra.mxu0 %v419
  %578 = vmatprep.subr.bf16.mxu0 0
  %579 = vmatpush1.bf16.msra.mxu0 %v420
  %580 = vmatprep.subr.bf16.mxu0 0
  %581 = vmatpush1.bf16.msra.mxu0 %v421
  %582 = vmatprep.subr.bf16.mxu0 0
  %583 = vmatpush1.bf16.msra.mxu0 %v422
  %584 = vmatprep.subr.bf16.mxu0 0
  %585 = vmatpush1.bf16.msra.mxu0 %v423
  %586 = vmatprep.mubr.bf16.mxu0 %v81
  %587 = vmatmul.mubr.bf16.gmra.mrb[0].mxu0 %v80
  %v588 = vpop.f32.mrb[0].mxu0
  %v589 = vadd.f32 %v548, %v588
  %v590 = vpop.f32.mrb[0].mxu0
  %v591 = vpop.f32.mrb[0].mxu0
  %v592 = vadd.f32 %v551, %v591
  %v593 = vpop.f32.mrb[0].mxu0
  %594 = vdwg.mxu0
  %v595 = vadd.f32 %v182, %v589
  %v596 = vadd.f32 %v183, %v592
  %vm597 = vcmask 523264
  %598 = vst.msk [vmem:[#allocation2] sm:$0xff] %vm597, %v595
  %599 = vst.msk [vmem:[#allocation2 + $0x8] sm:$0xff] %vm597, %v596
  // Predicated region
  $region34: #{pathway_regression.1} parent=0 // pred_check
    %p600 = pneg %p29
  $region35: #{pathway_regression.1} parent=0 // pred_check_branch
    %602 = sbr.rel (%p600) target = $region37
  $region36: #{pathway_regression.1} parent=0 // pred_region
    %v603 = vld [vmem:[#allocation2] sm:$0xff]
    %v604 = vld [vmem:[#allocation2 + $0x8] sm:$0xff]
    %v605 = vld [vmem:[%s2] sm:$0x1]
    %v607 = vlaneseq
    %v608 = vshrl.u32 %v607, 7
    %v609 = vsub.s32 0, %v608
    %v610 = vrot.slane %v605, %v609
    %v612 = vadd.f32 %v603, %v610
    %v613 = vadd.f32 %v604, %v610
    %v614 = vmax.f32 %v612, 0.0
    %v615 = vmax.f32 %v613, 0.0
    %v616 = vld [vmem:[%s3] sm:$0xff]
    %v617 = vld [vmem:[%s3 + $0x8] sm:$0xff]
    %v618 = vld [vmem:[%s3 + $0x10] sm:$0xff]
    %v619 = vld [vmem:[%s3 + $0x18] sm:$0xff]
    %v620 = vld [vmem:[%s3 + $0x20] sm:$0xff]
    %v621 = vld [vmem:[%s3 + $0x28] sm:$0xff]
    %v622 = vld [vmem:[%s3 + $0x30] sm:$0xff]
    %v623 = vld [vmem:[%s3 + $0x38] sm:$0xff]
    %v624 = vld [vmem:[%s4] sm:$0x1]
    %v626 = vlaneseq
    %v627 = vshrl.u32 %v626, 7
    %v628 = vsub.s32 0, %v627
    %v629 = vrot.slane %v624, %v628
    %v632 = vsel %vm597, %v614, 0
    %v635 = vsel %vm597, %v615, 0
    %637 = vmatprep.subr.mxu0 0.0
    %638 = vmatpush1.msra.mxu0 %v616
    %639 = vmatprep.subr.mxu0 0.0
    %640 = vmatpush1.msra.mxu0 %v617
    %641 = vmatprep.subr.mxu0 0.0
    %642 = vmatpush1.msra.mxu0 %v618
    %643 = vmatprep.subr.mxu0 0.0
    %644 = vmatpush1.msra.mxu0 %v619
    %645 = vmatprep.subr.mxu0 0.0
    %646 = vmatpush1.msra.mxu0 %v620
    %647 = vmatprep.subr.mxu0 0.0
    %648 = vmatpush1.msra.mxu0 %v621
    %649 = vmatprep.subr.mxu0 0.0
    %650 = vmatpush1.msra.mxu0 %v622
    %651 = vmatprep.subr.mxu0 0.0
    %652 = vmatpush1.msra.mxu0 %v623
    %653 = vmatprep.subr.mxu0 0.0
    %654 = vmatpush1.msra.mxu0 0.0
    %655 = vmatprep.subr.mxu0 0.0
    %656 = vmatpush1.msra.mxu0 0.0
    %657 = vmatprep.subr.mxu0 0.0
    %658 = vmatpush1.msra.mxu0 0.0
    %659 = vmatprep.subr.mxu0 0.0
    %660 = vmatpush1.msra.mxu0 0.0
    %661 = vmatprep.subr.mxu0 0.0
    %662 = vmatpush1.msra.mxu0 0.0
    %663 = vmatprep.subr.mxu0 0.0
    %664 = vmatpush1.msra.mxu0 0.0
    %665 = vmatprep.subr.mxu0 0.0
    %666 = vmatpush1.msra.mxu0 0.0
    %667 = vmatprep.subr.mxu0 0.0
    %668 = vmatpush1.msra.mxu0 0.0
    %669 = vmatprep.subr.mxu0 0.0
    %670 = vmatpush1.msra.mxu0 0.0
    %671 = vmatprep.subr.mxu0 0.0
    %672 = vmatpush1.msra.mxu0 0.0
    %673 = vmatprep.subr.mxu0 0.0
    %674 = vmatpush1.msra.mxu0 0.0
    %675 = vmatprep.subr.mxu0 0.0
    %676 = vmatpush1.msra.mxu0 0.0
    %677 = vmatprep.subr.mxu0 0.0
    %678 = vmatpush1.msra.mxu0 0.0
    %679 = vmatprep.subr.mxu0 0.0
    %680 = vmatpush1.msra.mxu0 0.0
    %681 = vmatprep.subr.mxu0 0.0
    %682 = vmatpush1.msra.mxu0 0.0
    %683 = vmatprep.subr.mxu0 0.0
    %684 = vmatpush1.msra.mxu0 0.0
    %685 = vmatprep.subr.mxu0 0.0
    %686 = vmatpush1.msra.mxu0 0.0
    %687 = vmatprep.subr.mxu0 0.0
    %688 = vmatpush1.msra.mxu0 0.0
    %689 = vmatprep.subr.mxu0 0.0
    %690 = vmatpush1.msra.mxu0 0.0
    %691 = vmatprep.subr.mxu0 0.0
    %692 = vmatpush1.msra.mxu0 0.0
    %693 = vmatprep.subr.mxu0 0.0
    %694 = vmatpush1.msra.mxu0 0.0
    %695 = vmatprep.subr.mxu0 0.0
    %696 = vmatpush1.msra.mxu0 0.0
    %697 = vmatprep.subr.mxu0 0.0
    %698 = vmatpush1.msra.mxu0 0.0
    %699 = vmatprep.subr.mxu0 0.0
    %700 = vmatpush1.msra.mxu0 0.0
    %701 = vmatprep.mubr.f32.mxu0 0.0
    %702 = vmatmul.mubr.f32.gmra.mrb[0].mxu0 %v632
    %v703 = vpop.f32.mrb[0].mxu0
    %v704 = vadd.f32 %v629, %v703
    %v705 = vpop.f32.mrb[0].mxu0
    %706 = vmatprep.mubr.f32.mxu0 0.0
    %707 = vmatmul.mubr.f32.gmra.mrb[0].mxu0 %v635
    %v708 = vpop.f32.mrb[0].mxu0
    %v709 = vadd.f32 %v629, %v708
    %v710 = vpop.f32.mrb[0].mxu0
    %711 = vdwg.mxu0
    %v712 = vmax.f32 %v704, 0.0
    %v713 = vmax.f32 %v709, 0.0
    %v714 = vld [vmem:[%s5] sm:$0x1]
    %v716 = vlaneseq
    %v717 = vshrl.u32 %v716, 7
    %v718 = vsub.s32 0, %v717
    %v719 = vrot.slane %v714, %v718
    %v721 = vmul.f32 %v712, %v719
    %v722 = vmul.f32 %v713, %v719
    %vm723 = vcmask 261120
    %v724 = vsel %vm723, %v721, 0.0
    %725 = vadd.xlane.f32.xlu0 %v724
    %v726 = vpop.xlane.xlu0 %725
    %v727 = vsel %vm723, %v722, 0.0
    %728 = vadd.xlane.f32.xlu0 %v727
    %v729 = vpop.xlane.xlu0 %728
    %v730 = vld [vmem:[#allocation3] sm:$0x1]
    %v732 = vlaneseq
    %v733 = vshrl.u32 %v732, 7
    %v734 = vsub.s32 0, %v733
    %v735 = vrot.slane %v730, %v734
    %v737 = vadd.f32 %v726, %v735
    %v738 = vadd.f32 %v729, %v735
    %vm739 = vcmask 7168
    %740 = vst.msk [vmem:[%s7] sm:$0xff] %vm739, %v737
    %741 = vst.msk [vmem:[%s7 + $0x8] sm:$0xff] %vm739, %v738
  $region37: #{pathway_regression.1} parent=0 // pred_fallthru
    _
  // Predicated region
  $region38: #{pathway_regression.1} parent=0 // pred_check
    _
  $region39: #{pathway_regression.1} parent=0 // pred_check_branch
    %743 = sbr.rel (0) target = $region41
  $region40: #{pathway_regression.1} parent=0 // pred_region
    _
  $region41: #{pathway_regression.1} parent=0 // pred_fallthru
    _
  // Predicated region
  $region42: #{pathway_regression.1} parent=0 // pred_check
    _
  $region43: #{pathway_regression.1} parent=0 // pred_check_branch
    %745 = sbr.rel (0) target = $region45
  $region44: #{pathway_regression.1} parent=0 // pred_region
    _
  $region45: #{pathway_regression.1} parent=0 // pred_fallthru
    _

</llo_original>
